<compile_context>
chip_gen: v5e
topology: v5e:2x2
jax: 0.10.0
libtpu: 0.0.40
codegen_flags: <defaults>
</compile_context>

<pallas_src>
import functools

import numpy as np

import jax
import jax.numpy as jnp
from jax import lax
from jax.experimental import pallas as pl
from jax.experimental.pallas import tpu as pltpu

_LANES = 128
_STRIP_ROWS = 8  # one f32 vreg per strip per input


def _ece_partial_kernel(x_ref, t_ref, d_ref, *, boundaries, n_boundaries_total,
                        logits, block_rows, strip_rows):
    """Per-block lane partials of D[b] = sum_{conf > bound_b}(conf - acc).

    Output block layout: boundary b occupies rows [b*strip_rows, (b+1)*strip_rows).
    """
    n_strips = block_rows // strip_rows
    n_active = len(boundaries)

    def strip_body(s, accs):
        row0 = pl.multiple_of(s * strip_rows, strip_rows)
        conf = x_ref[pl.ds(row0, strip_rows), :].astype(jnp.float32)
        if logits:
            # Numerically stable sigmoid on the EUP: 0.5*(tanh(x/2)+1).
            # Saturates to exactly 0.0 / 1.0 for large |x|, so the -100 logit
            # pad maps to conf == 0.0 and is excluded by the strict `> 0.0`.
            conf = 0.5 * (jnp.tanh(0.5 * conf) + 1.0)
        tgt = t_ref[pl.ds(row0, strip_rows), :].astype(jnp.float32)
        pred = jnp.where(conf >= 0.5, 1.0, 0.0)
        acc = jnp.where(pred == tgt, 1.0, 0.0)
        diff = conf - acc  # per-element (confidence - accuracy)
        # One cmp + one select + one add per boundary, all on the strip held
        # in vregs; the 16 accumulators stay live across the whole block.
        return tuple(a + jnp.where(conf > bound, diff, 0.0)
                     for a, bound in zip(accs, boundaries))

    init = tuple(jnp.zeros((strip_rows, _LANES), jnp.float32)
                 for _ in range(n_active))
    unroll = 4 if (n_strips % 4 == 0 and n_strips > 4) else None
    accs = lax.fori_loop(0, n_strips, strip_body, init, unroll=unroll)

    # Block epilogue: aligned, unmasked full-tile stores, once per block.
    for b in range(n_active):
        d_ref[b * strip_rows:(b + 1) * strip_rows, :] = accs[b]
    if n_active < n_boundaries_total:
        # Skipped boundaries (conf > 1.0 when conf <= 1.0 is guaranteed) are
        # statically zero.
        d_ref[n_active * strip_rows:n_boundaries_total * strip_rows, :] = (
            jnp.zeros(((n_boundaries_total - n_active) * strip_rows, _LANES),
                      jnp.float32))


def ece_loss_binary(inputs, targets, *, n_bins=15, logits=False,
                    max_block_rows=4096):
    """Matches ECELossBinary.forward; returns a shape-(1,) float32 array."""
    n = int(inputs.size)
    if n == 0:
        return jnp.zeros((1,), jnp.float32)

    strip_rows = _STRIP_ROWS
    rows = -(-n // _LANES)
    rows8 = ((rows + strip_rows - 1) // strip_rows) * strip_rows

    # v7x megacore: the (only) grid axis is what shards work across the two
    # TensorCores, so keep at least 2 (even) blocks whenever there are >= 2
    # row strips, shrinking block_rows instead of collapsing to one step.
    min_blocks = 2 if rows8 >= 2 * strip_rows else 1
    num_blocks = max(min_blocks, -(-rows8 // max_block_rows))
    if num_blocks > 1 and num_blocks % 2:
        num_blocks += 1
    block_rows = ((-(-rows8 // num_blocks) + strip_rows - 1)
                  // strip_rows) * strip_rows
    rows_pad = block_rows * num_blocks
    n_pad = rows_pad * _LANES

    conf = inputs.reshape(-1)
    tgt = targets.reshape(-1)
    if n_pad != n:
        # Pad confidence so it lands in no bin: 0.0 for probabilities (strict
        # `> 0.0` at boundary 0 excludes it), -100 logits -> sigmoid == 0.0.
        # Target pad of 1 for the logit path is pure defense (diff ~ conf ~ 0
        # even if the sigmoid were not exactly 0).
        conf = jnp.pad(conf, (0, n_pad - n),
                       constant_values=(-100.0 if logits else 0.0))
        tgt = jnp.pad(tgt, (0, n_pad - n),
                      constant_values=(1 if logits else 0))
    conf = conf.reshape(rows_pad, _LANES)
    tgt = tgt.reshape(rows_pad, _LANES)

    nb = n_bins + 1  # number of boundaries
    bounds = np.linspace(0.0, 1.0, nb, dtype=np.float32)
    # With the saturating sigmoid, conf <= 1.0 is guaranteed, so the
    # `conf > 1.0` pass is dead compute; raw probability inputs keep it
    # (out-of-range inputs must stay excluded from the last bin).
    active = tuple(float(b) for b in (bounds[:-1] if logits else bounds))

    kern = functools.partial(
        _ece_partial_kernel, boundaries=active, n_boundaries_total=nb,
        logits=logits, block_rows=block_rows, strip_rows=strip_rows)

    out_rows = nb * strip_rows  # 128 sublanes per block for n_bins=15
    partials = pl.pallas_call(
        kern,
        out_shape=jax.ShapeDtypeStruct((num_blocks * out_rows, _LANES),
                                       jnp.float32),
        grid=(num_blocks,),
        in_specs=[pl.BlockSpec((block_rows, _LANES), lambda i: (i, 0)),
                  pl.BlockSpec((block_rows, _LANES), lambda i: (i, 0))],
        out_specs=pl.BlockSpec((out_rows, _LANES), lambda i: (i, 0)),
        compiler_params=pltpu.CompilerParams(
            dimension_semantics=("parallel",)),  # steps are independent
    )(conf, tgt)

    # Tiny epilogue: combine per-block / per-sublane / per-lane partials, take
    # adjacent differences of the cumulative boundary sums, ECE = sum_j |.|/N.
    d = partials.reshape(num_blocks, nb, strip_rows, _LANES).sum(axis=(0, 2, 3))
    ece = jnp.sum(jnp.abs(d[:-1] - d[1:])) / n
    return ece.reshape(1).astype(jnp.float32)


def _ece_reference(inputs, targets, n_bins=15, logits=False):
    """Pure-JAX replica of the PyTorch forward for verification."""
    conf = inputs.reshape(-1).astype(jnp.float32)
    tgt = targets.reshape(-1).astype(jnp.float32)
    if logits:
        conf = jax.nn.sigmoid(conf)
    pred = (conf >= 0.5).astype(jnp.float32)
    acc = (pred == tgt).astype(jnp.float32)
    bounds = np.linspace(0.0, 1.0, n_bins + 1, dtype=np.float32)
    n = conf.shape[0]
    ece = jnp.zeros((1,), jnp.float32)
    for b in range(n_bins):
        in_bin = (conf > bounds[b]) & (conf <= bounds[b + 1])
        cnt = jnp.sum(in_bin.astype(jnp.float32))
        s_c = jnp.sum(jnp.where(in_bin, conf, 0.0))
        s_a = jnp.sum(jnp.where(in_bin, acc, 0.0))
        ece = ece + jnp.where(cnt > 0, jnp.abs(s_c - s_a) / n, 0.0)
    return ece


if __name__ == "__main__":
    key = jax.random.PRNGKey(0)
    k1, k2, k3 = jax.random.split(key, 3)

    # Binary model probabilities + binary targets, e.g. a segmentation map of
    # shape (batch=2, channels=4, H=16, W=16) -> 2048 samples after flattening.
    x = jax.random.uniform(k1, (2, 4, 16, 16), dtype=jnp.float32)
    y = (jax.random.uniform(k2, (2, 4, 16, 16)) > 0.5).astype(jnp.float32)

    ece = jax.block_until_ready(ece_loss_binary(x, y, n_bins=15, logits=False))
    ref = _ece_reference(x, y, n_bins=15, logits=False)
    assert ece.shape == (1,)
    assert jnp.allclose(ece, ref, atol=1e-5, rtol=1e-4), (ece, ref)

    # logits path: in-kernel tanh-based sigmoid (stable, EUP); values right at
    # a bin boundary can flip bins vs the reference sigmoid, so compare with a
    # slightly loose tolerance.
    z = jax.random.normal(k3, (2, 4, 16, 16), dtype=jnp.float32)
    ece_l = jax.block_until_ready(ece_loss_binary(z, y, n_bins=15, logits=True))
    ref_l = _ece_reference(z, y, n_bins=15, logits=True)
    assert ece_l.shape == (1,)
    assert bool(jnp.isfinite(ece_l[0]))
    assert jnp.allclose(ece_l, ref_l, atol=5e-3), (ece_l, ref_l)

    # Ragged size (not a multiple of 1024) to exercise the pad-exclusion path.
    x2 = jax.random.uniform(jax.random.PRNGKey(7), (3, 5, 11), dtype=jnp.float32)
    y2 = (jax.random.uniform(jax.random.PRNGKey(8), (3, 5, 11)) > 0.5).astype(
        jnp.float32)
    ece2 = jax.block_until_ready(ece_loss_binary(x2, y2))
    ref2 = _ece_reference(x2, y2)
    assert jnp.allclose(ece2, ref2, atol=1e-5, rtol=1e-4), (ece2, ref2)

    print("KERNEL_OK")
</pallas_src>

<mosaic_0001>
module attributes {stable_mosaic.version = 11 : i64} {
  func.func @_ece_partial_kernel(%arg0: i32, %arg1: memref<8x128xf32, #tpu.memory_space<vmem>>, %arg2: memref<8x128xf32, #tpu.memory_space<vmem>>, %arg3: memref<128x128xf32, #tpu.memory_space<vmem>>) attributes {dimension_semantics = [#tpu.dimension_semantics<parallel>], iteration_bounds = array<i64: 2>, scalar_prefetch = 0 : i64, scratch_operands = 0 : i64, tpu.core_type = #tpu.core_type<tc>, window_params = [{transform_indices = @transform_0, window_bounds = array<i64: 8, 128>}, {transform_indices = @transform_1, window_bounds = array<i64: 8, 128>}, {transform_indices = @transform_2, window_bounds = array<i64: 128, 128>}]} {
    %cst = arith.constant 0.000000e+00 : f32
    %0 = vector.broadcast %cst : f32 to vector<8x128xf32>
    %cst_0 = arith.constant 0.000000e+00 : f32
    %1 = vector.broadcast %cst_0 : f32 to vector<8x128xf32>
    %cst_1 = arith.constant 0.000000e+00 : f32
    %2 = vector.broadcast %cst_1 : f32 to vector<8x128xf32>
    %cst_2 = arith.constant 0.000000e+00 : f32
    %3 = vector.broadcast %cst_2 : f32 to vector<8x128xf32>
    %cst_3 = arith.constant 0.000000e+00 : f32
    %4 = vector.broadcast %cst_3 : f32 to vector<8x128xf32>
    %cst_4 = arith.constant 0.000000e+00 : f32
    %5 = vector.broadcast %cst_4 : f32 to vector<8x128xf32>
    %cst_5 = arith.constant 0.000000e+00 : f32
    %6 = vector.broadcast %cst_5 : f32 to vector<8x128xf32>
    %cst_6 = arith.constant 0.000000e+00 : f32
    %7 = vector.broadcast %cst_6 : f32 to vector<8x128xf32>
    %cst_7 = arith.constant 0.000000e+00 : f32
    %8 = vector.broadcast %cst_7 : f32 to vector<8x128xf32>
    %cst_8 = arith.constant 0.000000e+00 : f32
    %9 = vector.broadcast %cst_8 : f32 to vector<8x128xf32>
    %cst_9 = arith.constant 0.000000e+00 : f32
    %10 = vector.broadcast %cst_9 : f32 to vector<8x128xf32>
    %cst_10 = arith.constant 0.000000e+00 : f32
    %11 = vector.broadcast %cst_10 : f32 to vector<8x128xf32>
    %cst_11 = arith.constant 0.000000e+00 : f32
    %12 = vector.broadcast %cst_11 : f32 to vector<8x128xf32>
    %cst_12 = arith.constant 0.000000e+00 : f32
    %13 = vector.broadcast %cst_12 : f32 to vector<8x128xf32>
    %cst_13 = arith.constant 0.000000e+00 : f32
    %14 = vector.broadcast %cst_13 : f32 to vector<8x128xf32>
    %cst_14 = arith.constant 0.000000e+00 : f32
    %15 = vector.broadcast %cst_14 : f32 to vector<8x128xf32>
    %c0_i32 = arith.constant 0 : i32
    %c8_i32 = arith.constant 8 : i32
    %16 = arith.muli %c0_i32, %c8_i32 : i32
    %17 = tpu.assume_multiple %16, 8 : i32
    %18 = arith.index_cast %17 : i32 to index
    %c0 = arith.constant 0 : index
    %19 = vector.load %arg1[%18, %c0] : memref<8x128xf32, #tpu.memory_space<vmem>>, vector<8x128xf32>
    %20 = arith.index_cast %17 : i32 to index
    %c0_15 = arith.constant 0 : index
    %21 = vector.load %arg2[%20, %c0_15] : memref<8x128xf32, #tpu.memory_space<vmem>>, vector<8x128xf32>
    %cst_16 = arith.constant 5.000000e-01 : f32
    %22 = vector.broadcast %cst_16 : f32 to vector<8x128xf32>
    %23 = arith.cmpf oge, %19, %22 : vector<8x128xf32>
    %cst_17 = arith.constant 1.000000e+00 : f32
    %cst_18 = arith.constant 0.000000e+00 : f32
    %24 = vector.broadcast %cst_17 : f32 to vector<8x128xf32>
    %25 = vector.broadcast %cst_18 : f32 to vector<8x128xf32>
    %26 = arith.select %23, %24, %25 : vector<8x128xi1>, vector<8x128xf32>
    %27 = arith.cmpf oeq, %26, %21 : vector<8x128xf32>
    %cst_19 = arith.constant 1.000000e+00 : f32
    %cst_20 = arith.constant 0.000000e+00 : f32
    %28 = vector.broadcast %cst_19 : f32 to vector<8x128xf32>
    %29 = vector.broadcast %cst_20 : f32 to vector<8x128xf32>
    %30 = arith.select %27, %28, %29 : vector<8x128xi1>, vector<8x128xf32>
    %31 = arith.subf %19, %30 : vector<8x128xf32>
    %cst_21 = arith.constant 0.000000e+00 : f32
    %32 = vector.broadcast %cst_21 : f32 to vector<8x128xf32>
    %33 = arith.cmpf ogt, %19, %32 : vector<8x128xf32>
    %cst_22 = arith.constant 0.000000e+00 : f32
    %34 = vector.broadcast %cst_22 : f32 to vector<8x128xf32>
    %35 = arith.select %33, %31, %34 : vector<8x128xi1>, vector<8x128xf32>
    %36 = arith.addf %0, %35 : vector<8x128xf32>
    %cst_23 = arith.constant 0.0666666701 : f32
    %37 = vector.broadcast %cst_23 : f32 to vector<8x128xf32>
    %38 = arith.cmpf ogt, %19, %37 : vector<8x128xf32>
    %cst_24 = arith.constant 0.000000e+00 : f32
    %39 = vector.broadcast %cst_24 : f32 to vector<8x128xf32>
    %40 = arith.select %38, %31, %39 : vector<8x128xi1>, vector<8x128xf32>
    %41 = arith.addf %1, %40 : vector<8x128xf32>
    %cst_25 = arith.constant 0.13333334 : f32
    %42 = vector.broadcast %cst_25 : f32 to vector<8x128xf32>
    %43 = arith.cmpf ogt, %19, %42 : vector<8x128xf32>
    %cst_26 = arith.constant 0.000000e+00 : f32
    %44 = vector.broadcast %cst_26 : f32 to vector<8x128xf32>
    %45 = arith.select %43, %31, %44 : vector<8x128xi1>, vector<8x128xf32>
    %46 = arith.addf %2, %45 : vector<8x128xf32>
    %cst_27 = arith.constant 2.000000e-01 : f32
    %47 = vector.broadcast %cst_27 : f32 to vector<8x128xf32>
    %48 = arith.cmpf ogt, %19, %47 : vector<8x128xf32>
    %cst_28 = arith.constant 0.000000e+00 : f32
    %49 = vector.broadcast %cst_28 : f32 to vector<8x128xf32>
    %50 = arith.select %48, %31, %49 : vector<8x128xi1>, vector<8x128xf32>
    %51 = arith.addf %3, %50 : vector<8x128xf32>
    %cst_29 = arith.constant 0.266666681 : f32
    %52 = vector.broadcast %cst_29 : f32 to vector<8x128xf32>
    %53 = arith.cmpf ogt, %19, %52 : vector<8x128xf32>
    %cst_30 = arith.constant 0.000000e+00 : f32
    %54 = vector.broadcast %cst_30 : f32 to vector<8x128xf32>
    %55 = arith.select %53, %31, %54 : vector<8x128xi1>, vector<8x128xf32>
    %56 = arith.addf %4, %55 : vector<8x128xf32>
    %cst_31 = arith.constant 0.333333343 : f32
    %57 = vector.broadcast %cst_31 : f32 to vector<8x128xf32>
    %58 = arith.cmpf ogt, %19, %57 : vector<8x128xf32>
    %cst_32 = arith.constant 0.000000e+00 : f32
    %59 = vector.broadcast %cst_32 : f32 to vector<8x128xf32>
    %60 = arith.select %58, %31, %59 : vector<8x128xi1>, vector<8x128xf32>
    %61 = arith.addf %5, %60 : vector<8x128xf32>
    %cst_33 = arith.constant 4.000000e-01 : f32
    %62 = vector.broadcast %cst_33 : f32 to vector<8x128xf32>
    %63 = arith.cmpf ogt, %19, %62 : vector<8x128xf32>
    %cst_34 = arith.constant 0.000000e+00 : f32
    %64 = vector.broadcast %cst_34 : f32 to vector<8x128xf32>
    %65 = arith.select %63, %31, %64 : vector<8x128xi1>, vector<8x128xf32>
    %66 = arith.addf %6, %65 : vector<8x128xf32>
    %cst_35 = arith.constant 0.466666669 : f32
    %67 = vector.broadcast %cst_35 : f32 to vector<8x128xf32>
    %68 = arith.cmpf ogt, %19, %67 : vector<8x128xf32>
    %cst_36 = arith.constant 0.000000e+00 : f32
    %69 = vector.broadcast %cst_36 : f32 to vector<8x128xf32>
    %70 = arith.select %68, %31, %69 : vector<8x128xi1>, vector<8x128xf32>
    %71 = arith.addf %7, %70 : vector<8x128xf32>
    %cst_37 = arith.constant 0.533333361 : f32
    %72 = vector.broadcast %cst_37 : f32 to vector<8x128xf32>
    %73 = arith.cmpf ogt, %19, %72 : vector<8x128xf32>
    %cst_38 = arith.constant 0.000000e+00 : f32
    %74 = vector.broadcast %cst_38 : f32 to vector<8x128xf32>
    %75 = arith.select %73, %31, %74 : vector<8x128xi1>, vector<8x128xf32>
    %76 = arith.addf %8, %75 : vector<8x128xf32>
    %cst_39 = arith.constant 6.000000e-01 : f32
    %77 = vector.broadcast %cst_39 : f32 to vector<8x128xf32>
    %78 = arith.cmpf ogt, %19, %77 : vector<8x128xf32>
    %cst_40 = arith.constant 0.000000e+00 : f32
    %79 = vector.broadcast %cst_40 : f32 to vector<8x128xf32>
    %80 = arith.select %78, %31, %79 : vector<8x128xi1>, vector<8x128xf32>
    %81 = arith.addf %9, %80 : vector<8x128xf32>
    %cst_41 = arith.constant 0.666666686 : f32
    %82 = vector.broadcast %cst_41 : f32 to vector<8x128xf32>
    %83 = arith.cmpf ogt, %19, %82 : vector<8x128xf32>
    %cst_42 = arith.constant 0.000000e+00 : f32
    %84 = vector.broadcast %cst_42 : f32 to vector<8x128xf32>
    %85 = arith.select %83, %31, %84 : vector<8x128xi1>, vector<8x128xf32>
    %86 = arith.addf %10, %85 : vector<8x128xf32>
    %cst_43 = arith.constant 0.733333349 : f32
    %87 = vector.broadcast %cst_43 : f32 to vector<8x128xf32>
    %88 = arith.cmpf ogt, %19, %87 : vector<8x128xf32>
    %cst_44 = arith.constant 0.000000e+00 : f32
    %89 = vector.broadcast %cst_44 : f32 to vector<8x128xf32>
    %90 = arith.select %88, %31, %89 : vector<8x128xi1>, vector<8x128xf32>
    %91 = arith.addf %11, %90 : vector<8x128xf32>
    %cst_45 = arith.constant 8.000000e-01 : f32
    %92 = vector.broadcast %cst_45 : f32 to vector<8x128xf32>
    %93 = arith.cmpf ogt, %19, %92 : vector<8x128xf32>
    %cst_46 = arith.constant 0.000000e+00 : f32
    %94 = vector.broadcast %cst_46 : f32 to vector<8x128xf32>
    %95 = arith.select %93, %31, %94 : vector<8x128xi1>, vector<8x128xf32>
    %96 = arith.addf %12, %95 : vector<8x128xf32>
    %cst_47 = arith.constant 0.866666674 : f32
    %97 = vector.broadcast %cst_47 : f32 to vector<8x128xf32>
    %98 = arith.cmpf ogt, %19, %97 : vector<8x128xf32>
    %cst_48 = arith.constant 0.000000e+00 : f32
    %99 = vector.broadcast %cst_48 : f32 to vector<8x128xf32>
    %100 = arith.select %98, %31, %99 : vector<8x128xi1>, vector<8x128xf32>
    %101 = arith.addf %13, %100 : vector<8x128xf32>
    %cst_49 = arith.constant 0.933333337 : f32
    %102 = vector.broadcast %cst_49 : f32 to vector<8x128xf32>
    %103 = arith.cmpf ogt, %19, %102 : vector<8x128xf32>
    %cst_50 = arith.constant 0.000000e+00 : f32
    %104 = vector.broadcast %cst_50 : f32 to vector<8x128xf32>
    %105 = arith.select %103, %31, %104 : vector<8x128xi1>, vector<8x128xf32>
    %106 = arith.addf %14, %105 : vector<8x128xf32>
    %cst_51 = arith.constant 1.000000e+00 : f32
    %107 = vector.broadcast %cst_51 : f32 to vector<8x128xf32>
    %108 = arith.cmpf ogt, %19, %107 : vector<8x128xf32>
    %cst_52 = arith.constant 0.000000e+00 : f32
    %109 = vector.broadcast %cst_52 : f32 to vector<8x128xf32>
    %110 = arith.select %108, %31, %109 : vector<8x128xi1>, vector<8x128xf32>
    %111 = arith.addf %15, %110 : vector<8x128xf32>
    %c1_i32 = arith.constant 1 : i32
    %c0_53 = arith.constant 0 : index
    %c0_54 = arith.constant 0 : index
    %112 = vector.load %arg3[%c0_53, %c0_54] : memref<128x128xf32, #tpu.memory_space<vmem>>, vector<8x128xf32>
    tpu.vector_store %arg3[%c0_53, %c0_54], %36 {strides = array<i32>} : memref<128x128xf32, #tpu.memory_space<vmem>>, vector<8x128xf32>,
    %c8 = arith.constant 8 : index
    %c0_55 = arith.constant 0 : index
    %113 = vector.load %arg3[%c8, %c0_55] : memref<128x128xf32, #tpu.memory_space<vmem>>, vector<8x128xf32>
    tpu.vector_store %arg3[%c8, %c0_55], %41 {strides = array<i32>} : memref<128x128xf32, #tpu.memory_space<vmem>>, vector<8x128xf32>,
    %c16 = arith.constant 16 : index
    %c0_56 = arith.constant 0 : index
    %114 = vector.load %arg3[%c16, %c0_56] : memref<128x128xf32, #tpu.memory_space<vmem>>, vector<8x128xf32>
    tpu.vector_store %arg3[%c16, %c0_56], %46 {strides = array<i32>} : memref<128x128xf32, #tpu.memory_space<vmem>>, vector<8x128xf32>,
    %c24 = arith.constant 24 : index
    %c0_57 = arith.constant 0 : index
    %115 = vector.load %arg3[%c24, %c0_57] : memref<128x128xf32, #tpu.memory_space<vmem>>, vector<8x128xf32>
    tpu.vector_store %arg3[%c24, %c0_57], %51 {strides = array<i32>} : memref<128x128xf32, #tpu.memory_space<vmem>>, vector<8x128xf32>,
    %c32 = arith.constant 32 : index
    %c0_58 = arith.constant 0 : index
    %116 = vector.load %arg3[%c32, %c0_58] : memref<128x128xf32, #tpu.memory_space<vmem>>, vector<8x128xf32>
    tpu.vector_store %arg3[%c32, %c0_58], %56 {strides = array<i32>} : memref<128x128xf32, #tpu.memory_space<vmem>>, vector<8x128xf32>,
    %c40 = arith.constant 40 : index
    %c0_59 = arith.constant 0 : index
    %117 = vector.load %arg3[%c40, %c0_59] : memref<128x128xf32, #tpu.memory_space<vmem>>, vector<8x128xf32>
    tpu.vector_store %arg3[%c40, %c0_59], %61 {strides = array<i32>} : memref<128x128xf32, #tpu.memory_space<vmem>>, vector<8x128xf32>,
    %c48 = arith.constant 48 : index
    %c0_60 = arith.constant 0 : index
    %118 = vector.load %arg3[%c48, %c0_60] : memref<128x128xf32, #tpu.memory_space<vmem>>, vector<8x128xf32>
    tpu.vector_store %arg3[%c48, %c0_60], %66 {strides = array<i32>} : memref<128x128xf32, #tpu.memory_space<vmem>>, vector<8x128xf32>,
    %c56 = arith.constant 56 : index
    %c0_61 = arith.constant 0 : index
    %119 = vector.load %arg3[%c56, %c0_61] : memref<128x128xf32, #tpu.memory_space<vmem>>, vector<8x128xf32>
    tpu.vector_store %arg3[%c56, %c0_61], %71 {strides = array<i32>} : memref<128x128xf32, #tpu.memory_space<vmem>>, vector<8x128xf32>,
    %c64 = arith.constant 64 : index
    %c0_62 = arith.constant 0 : index
    %120 = vector.load %arg3[%c64, %c0_62] : memref<128x128xf32, #tpu.memory_space<vmem>>, vector<8x128xf32>
    tpu.vector_store %arg3[%c64, %c0_62], %76 {strides = array<i32>} : memref<128x128xf32, #tpu.memory_space<vmem>>, vector<8x128xf32>,
    %c72 = arith.constant 72 : index
    %c0_63 = arith.constant 0 : index
    %121 = vector.load %arg3[%c72, %c0_63] : memref<128x128xf32, #tpu.memory_space<vmem>>, vector<8x128xf32>
    tpu.vector_store %arg3[%c72, %c0_63], %81 {strides = array<i32>} : memref<128x128xf32, #tpu.memory_space<vmem>>, vector<8x128xf32>,
    %c80 = arith.constant 80 : index
    %c0_64 = arith.constant 0 : index
    %122 = vector.load %arg3[%c80, %c0_64] : memref<128x128xf32, #tpu.memory_space<vmem>>, vector<8x128xf32>
    tpu.vector_store %arg3[%c80, %c0_64], %86 {strides = array<i32>} : memref<128x128xf32, #tpu.memory_space<vmem>>, vector<8x128xf32>,
    %c88 = arith.constant 88 : index
    %c0_65 = arith.constant 0 : index
    %123 = vector.load %arg3[%c88, %c0_65] : memref<128x128xf32, #tpu.memory_space<vmem>>, vector<8x128xf32>
    tpu.vector_store %arg3[%c88, %c0_65], %91 {strides = array<i32>} : memref<128x128xf32, #tpu.memory_space<vmem>>, vector<8x128xf32>,
    %c96 = arith.constant 96 : index
    %c0_66 = arith.constant 0 : index
    %124 = vector.load %arg3[%c96, %c0_66] : memref<128x128xf32, #tpu.memory_space<vmem>>, vector<8x128xf32>
    tpu.vector_store %arg3[%c96, %c0_66], %96 {strides = array<i32>} : memref<128x128xf32, #tpu.memory_space<vmem>>, vector<8x128xf32>,
    %c104 = arith.constant 104 : index
    %c0_67 = arith.constant 0 : index
    %125 = vector.load %arg3[%c104, %c0_67] : memref<128x128xf32, #tpu.memory_space<vmem>>, vector<8x128xf32>
    tpu.vector_store %arg3[%c104, %c0_67], %101 {strides = array<i32>} : memref<128x128xf32, #tpu.memory_space<vmem>>, vector<8x128xf32>,
    %c112 = arith.constant 112 : index
    %c0_68 = arith.constant 0 : index
    %126 = vector.load %arg3[%c112, %c0_68] : memref<128x128xf32, #tpu.memory_space<vmem>>, vector<8x128xf32>
    tpu.vector_store %arg3[%c112, %c0_68], %106 {strides = array<i32>} : memref<128x128xf32, #tpu.memory_space<vmem>>, vector<8x128xf32>,
    %c120 = arith.constant 120 : index
    %c0_69 = arith.constant 0 : index
    %127 = vector.load %arg3[%c120, %c0_69] : memref<128x128xf32, #tpu.memory_space<vmem>>, vector<8x128xf32>
    tpu.vector_store %arg3[%c120, %c0_69], %111 {strides = array<i32>} : memref<128x128xf32, #tpu.memory_space<vmem>>, vector<8x128xf32>,
    return
  }
  func.func @transform_0(%arg0: i32) -> (i32, i32) {
    %c0_i32 = arith.constant 0 : i32
    %c0_i32_0 = arith.constant 0 : i32
    return %arg0, %c0_i32 : i32, i32
  }
  func.func @transform_1(%arg0: i32) -> (i32, i32) {
    %c0_i32 = arith.constant 0 : i32
    %c0_i32_0 = arith.constant 0 : i32
    return %arg0, %c0_i32 : i32, i32
  }
  func.func @transform_2(%arg0: i32) -> (i32, i32) {
    %c0_i32 = arith.constant 0 : i32
    %c0_i32_0 = arith.constant 0 : i32
    return %arg0, %c0_i32 : i32, i32
  }
}

</mosaic_0001>

<llo_original>
// kernel: tpu_custom_call.1
$region0: #{tpu_custom_call.1}
  #allocation0 [shape = 'u32[]', space=smem, size = 0x4, offset = 0x4, fixed_abs, tag = 'smem constant byte address 0x4 - core index']
  #allocation1 [shape = 'u32[72,128]{1,0:T(1,128)}', space=vmem, size = 0x9000, scoped, tag = 'internal scratch']
  %s0 = inlined_call_operand.hbm [shape: f32[16,128], index: 0, kind: input, shape index: {}]
  %s1 = inlined_call_operand.hbm [shape: f32[16,128], index: 1, kind: input, shape index: {}]
  %s2 = inlined_call_operand.hbm [shape: f32[256,128], index: 2, kind: output, shape index: {}]
  %s3 = sld [smem:[#allocation0]]
  $region49: #{tpu_custom_call.1} parent=0
    _
  %s5 = ssub.s32 1, %s3
  %s6 = scalar_select 0, %s5, %s3
  $region1: #{tpu_custom_call.1} parent=0
    #allocation2 [shape = 'u8[8192]{0}', space=vmem, size = 0x2000, scoped, tag = 'input window, operand 0']
    #allocation3 [shape = 's32[2]{0}', space=sflag, size = 0x8, scoped, tag = 'scoped memory for tpu_custom_call.1']
    #allocation4 [shape = 's32[2]{0}', space=sflag, size = 0x8, scoped, tag = 'scoped memory for tpu_custom_call.1']
    #allocation5 [shape = 'u8[8192]{0}', space=vmem, size = 0x2000, scoped, tag = 'input window, operand 1']
    #allocation6 [shape = 's32[2]{0}', space=sflag, size = 0x8, scoped, tag = 'scoped memory for tpu_custom_call.1']
    #allocation7 [shape = 'u8[131072]{0}', space=vmem, size = 0x20000, scoped, tag = 'output window, operand 0']
    %7 = vsyncpa [#allocation3], 0
    %s8 = scalar_lea.sflag [#allocation3], 1
    %9 = vsyncpa %s8, 0
    %10 = vsyncpa [#allocation6], 0
    %s11 = scalar_lea.sflag [#allocation6], 1
    %12 = vsyncpa %s11, 0
    %13 = vsyncpa [#allocation4], 0
    %s14 = scalar_lea.sflag [#allocation4], 1
    %15 = vsyncpa %s14, 0
    loop: start=0, step=1, limit=4
    $region2: #{tpu_custom_call.1} parent=1 // loop_pre_header
      _
    $region3: #{tpu_custom_call.1} parent=1 // loop_header
      %s17 = sphi 0, %s21
      %p18 = scmp.ge.s32.totalorder %s17, 4
      %s27 = sphi 0, %s29
      %s30 = sphi 0, %s27
      %s31 = sphi 0, %s30
      %s47 = sphi 0, %s31
      %s53 = sphi 0, %s55
      %s56 = sphi 0, %s53
      %s57 = sphi 0, %s56
      %s73 = sphi 0, %s57
      %s79 = sphi 0, %s81
      %s82 = sphi 0, %s79
      %s83 = sphi 0, %s82
      %s99 = sphi 0, %s83
    $region4: #{tpu_custom_call.1} parent=1 // loop_header_branch
      %20 = sbr.rel (%p18) target = $region8
    $region5: #{tpu_custom_call.1} parent=1 // loop_body
      %s22 = ssub.s32 %s17, 1
      %s23 = ssub.s32 %s17, 2
      %s24 = sadd.s32 %s17, 1
      %s25 = ssub.s32 %s17, %s24
      %p26 = scmp.eq.s32.totalorder %s25, 0
      %s28 = sadd.s32 %s27, 1
      %s29 = scalar_select %p26, %s27, %s28
      %p32 = pneg %p26
      %p33 = scmp.eq.s32.totalorder %s17, 1
      %p34 = por %p32, %p33
      %p35 = scmp.ne.s32.totalorder %s27, %s30
      %p36 = scmp.eq.s32.totalorder %s17, 0
      %p37 = por %p35, %p36
      %p38 = scmp.ne.s32.totalorder %s27, %s30
      %p39 = scmp.eq.s32.totalorder %s22, 1
      %p40 = por %p38, %p39
      %p41 = scmp.ne.s32.totalorder %s30, %s31
      %p42 = scmp.eq.s32.totalorder %s22, 0
      %p43 = por %p41, %p42
      %p44 = scmp.ne.s32.totalorder %s30, %s31
      %p45 = scmp.eq.s32.totalorder %s23, 1
      %p46 = por %p44, %p45
      %p48 = scmp.ne.s32.totalorder %s31, %s47
      %p49 = scmp.eq.s32.totalorder %s23, 0
      %p50 = por %p48, %p49
      %s51 = ssub.s32 %s17, %s24
      %p52 = scmp.eq.s32.totalorder %s51, 0
      %s54 = sadd.s32 %s53, 1
      %s55 = scalar_select %p52, %s53, %s54
      %p58 = pneg %p52
      %p59 = scmp.eq.s32.totalorder %s17, 1
      %p60 = por %p58, %p59
      %p61 = scmp.ne.s32.totalorder %s53, %s56
      %p62 = scmp.eq.s32.totalorder %s17, 0
      %p63 = por %p61, %p62
      %p64 = scmp.ne.s32.totalorder %s53, %s56
      %p65 = scmp.eq.s32.totalorder %s22, 1
      %p66 = por %p64, %p65
      %p67 = scmp.ne.s32.totalorder %s56, %s57
      %p68 = scmp.eq.s32.totalorder %s22, 0
      %p69 = por %p67, %p68
      %p70 = scmp.ne.s32.totalorder %s56, %s57
      %p71 = scmp.eq.s32.totalorder %s23, 1
      %p72 = por %p70, %p71
      %p74 = scmp.ne.s32.totalorder %s57, %s73
      %p75 = scmp.eq.s32.totalorder %s23, 0
      %p76 = por %p74, %p75
      %s77 = ssub.s32 %s17, %s24
      %p78 = scmp.eq.s32.totalorder %s77, 0
      %s80 = sadd.s32 %s79, 1
      %s81 = scalar_select %p78, %s79, %s80
      %p84 = pneg %p78
      %p85 = scmp.eq.s32.totalorder %s17, 1
      %p86 = por %p84, %p85
      %p87 = scmp.ne.s32.totalorder %s79, %s82
      %p88 = scmp.eq.s32.totalorder %s17, 0
      %p89 = por %p87, %p88
      %p90 = scmp.ne.s32.totalorder %s79, %s82
      %p91 = scmp.eq.s32.totalorder %s22, 1
      %p92 = por %p90, %p91
      %p93 = scmp.ne.s32.totalorder %s82, %s83
      %p94 = scmp.eq.s32.totalorder %s22, 0
      %p95 = por %p93, %p94
      %p96 = scmp.ne.s32.totalorder %s82, %s83
      %p97 = scmp.eq.s32.totalorder %s23, 1
      %p98 = por %p96, %p97
      %p100 = scmp.ne.s32.totalorder %s83, %s99
      %p101 = scmp.eq.s32.totalorder %s23, 0
      %p102 = por %p100, %p101
      %p103 = scmp.le.s32.totalorder 1, %s17
      %p104 = scmp.lt.s32.totalorder %s17, 3
      %p105 = pnand %p103, %p104
      %p106 = pneg %p105
      // Predicated region
      $region9: #{tpu_custom_call.1} parent=5 // pred_check
        _
      $region10: #{tpu_custom_call.1} parent=5 // pred_check_branch
        %108 = sbr.rel (%p105) target = $region12
      $region11: #{tpu_custom_call.1} parent=5 // pred_region
        %s109 = ssub.s32 %s17, 1
      $region12: #{tpu_custom_call.1} parent=5 // pred_fallthru
        _
      %p110 = scmp.lt.s32.totalorder %s17, 2
      // Predicated region
      $region13: #{tpu_custom_call.1} parent=5 // pred_check
        %p111 = pneg %p110
      $region14: #{tpu_custom_call.1} parent=5 // pred_check_branch
        %113 = sbr.rel (%p111) target = $region16
      $region15: #{tpu_custom_call.1} parent=5 // pred_region
        // Predicated region
        $region17: #{tpu_custom_call.1} parent=15 // pred_check
          %p114 = pneg %p37
        $region18: #{tpu_custom_call.1} parent=15 // pred_check_branch
          %116 = sbr.rel (%p114) target = $region20
        $region19: #{tpu_custom_call.1} parent=15 // pred_region
          %s117 = sand.u32 %s27, 1
          %s118 = scalar_lea.sflag [#allocation3], %s117
          %s119 = sand.u32 %s27, 1
          %s120 = smul.addr %s119, 8
          %s121 = scalar_lea.vmem [#allocation2], %s120
          %123 = vsyncadd %s118, 0
          %s124 = smul.addr %s17, 8
          %s125 = scalar_lea.hbm %s0, %s124
          %s127 = sshll.u32 %s125, 4
          %s128 = int_to_ptr.hbm [resolvable:$true] %s127
          %s129 = sshll.u32 %s121, 4
          %s130 = int_to_ptr.vmem [resolvable:$true] %s129
          %132 = dma.hbm_to_vmem [thread:$0]  %s128, 128, %s130, %s118
        $region20: #{tpu_custom_call.1} parent=15 // pred_fallthru
          _
        // Predicated region
        $region21: #{tpu_custom_call.1} parent=15 // pred_check
          %p133 = pneg %p63
        $region22: #{tpu_custom_call.1} parent=15 // pred_check_branch
          %135 = sbr.rel (%p133) target = $region24
        $region23: #{tpu_custom_call.1} parent=15 // pred_region
          %s136 = sand.u32 %s53, 1
          %s137 = scalar_lea.sflag [#allocation6], %s136
          %s138 = sand.u32 %s53, 1
          %s139 = smul.addr %s138, 8
          %s140 = scalar_lea.vmem [#allocation5], %s139
          %142 = vsyncadd %s137, 0
          %s143 = smul.addr %s17, 8
          %s144 = scalar_lea.hbm %s1, %s143
          %s146 = sshll.u32 %s144, 4
          %s147 = int_to_ptr.hbm [resolvable:$true] %s146
          %s148 = sshll.u32 %s140, 4
          %s149 = int_to_ptr.vmem [resolvable:$true] %s148
          %151 = dma.hbm_to_vmem [thread:$0]  %s147, 128, %s149, %s137
        $region24: #{tpu_custom_call.1} parent=15 // pred_fallthru
          _
      $region16: #{tpu_custom_call.1} parent=5 // pred_fallthru
        _
      %p152 = scmp.le.s32.totalorder 1, %s17
      %p153 = scmp.lt.s32.totalorder %s17, 3
      %p154 = pnand %p152, %p153
      %p155 = pneg %p154
      // Predicated region
      $region25: #{tpu_custom_call.1} parent=5 // pred_check
        _
      $region26: #{tpu_custom_call.1} parent=5 // pred_check_branch
        %157 = sbr.rel (%p154) target = $region28
      $region27: #{tpu_custom_call.1} parent=5 // pred_region
        %s158 = ssub.s32 %s17, 1
        %s159 = sand.u32 %s30, 1
        %s160 = scalar_lea.sflag [#allocation3], %s159
        %s161 = sand.u32 %s30, 1
        %s162 = smul.addr %s161, 8
        %s163 = scalar_lea.vmem [#allocation2], %s162
        // Predicated region
        $region29: #{tpu_custom_call.1} parent=27 // pred_check
          %p164 = pneg %p43
        $region30: #{tpu_custom_call.1} parent=27 // pred_check_branch
          %166 = sbr.rel (%p164) target = $region32
        $region31: #{tpu_custom_call.1} parent=27 // pred_region
          %168 = dma.done %s160, 128
        $region32: #{tpu_custom_call.1} parent=27 // pred_fallthru
          _
        %s169 = sand.u32 %s56, 1
        %s170 = scalar_lea.sflag [#allocation6], %s169
        %s171 = sand.u32 %s56, 1
        %s172 = smul.addr %s171, 8
        %s173 = scalar_lea.vmem [#allocation5], %s172
        // Predicated region
        $region33: #{tpu_custom_call.1} parent=27 // pred_check
          %p174 = pneg %p69
        $region34: #{tpu_custom_call.1} parent=27 // pred_check_branch
          %176 = sbr.rel (%p174) target = $region36
        $region35: #{tpu_custom_call.1} parent=27 // pred_region
          %178 = dma.done %s170, 128
        $region36: #{tpu_custom_call.1} parent=27 // pred_fallthru
          _
        %s179 = sand.u32 %s30, 1
        %s180 = scalar_lea.sflag [#allocation3], %s179
        %s181 = sand.u32 %s30, 1
        %s182 = smul.addr %s181, 8
        %s183 = scalar_lea.vmem [#allocation2], %s182
        %p184 = pneg %p43
        %p185 = pneg %p40
        %s186 = sand.u32 %s56, 1
        %s187 = scalar_lea.sflag [#allocation6], %s186
        %s188 = sand.u32 %s56, 1
        %s189 = smul.addr %s188, 8
        %s190 = scalar_lea.vmem [#allocation5], %s189
        %p191 = pneg %p69
        %p192 = pneg %p66
        %p193 = pneg %p95
        %p194 = pneg %p92
        %s195 = sand.u32 %s82, 1
        %s196 = scalar_lea.sflag [#allocation4], %s195
        %s197 = sand.u32 %s82, 1
        %s198 = smul.addr %s197, 128
        %s199 = scalar_lea.vmem [#allocation7], %s198
        %s200 = smul.u32 16, %s22
        %v201 = vld [vmem:[%s163] sm:$0xff]
        %v202 = vld [vmem:[%s173] sm:$0xff]
        %vm203 = vcmp.ge.f32.partialorder %v201, 0.5
        %v204 = vsel %vm203, 1.0, 0.0
        %vm205 = vcmp.eq.f32.partialorder %v204, %v202
        %v206 = vsel %vm205, 1.0, 0.0
        %v207 = vsub.f32 %v201, %v206
        %vm208 = vcmp.gt.f32.partialorder %v201, 0.0
        %v209 = vsel %vm208, %v207, 0.0
        %v210 = vadd.f32 %v209, 0.0
        %vm211 = vcmp.gt.f32.partialorder %v201, 0.06666667
        %v212 = vsel %vm211, %v207, 0.0
        %v213 = vadd.f32 %v212, 0.0
        %vm214 = vcmp.gt.f32.partialorder %v201, 0.13333334
        %v215 = vsel %vm214, %v207, 0.0
        %v216 = vadd.f32 %v215, 0.0
        %vm217 = vcmp.gt.f32.partialorder %v201, 0.2
        %v218 = vsel %vm217, %v207, 0.0
        %v219 = vadd.f32 %v218, 0.0
        %vm220 = vcmp.gt.f32.partialorder %v201, 0.26666668
        %v221 = vsel %vm220, %v207, 0.0
        %v222 = vadd.f32 %v221, 0.0
        %vm223 = vcmp.gt.f32.partialorder %v201, 0.33333334
        %v224 = vsel %vm223, %v207, 0.0
        %v225 = vadd.f32 %v224, 0.0
        %vm226 = vcmp.gt.f32.partialorder %v201, 0.4
        %v227 = vsel %vm226, %v207, 0.0
        %v228 = vadd.f32 %v227, 0.0
        %vm229 = vcmp.gt.f32.partialorder %v201, 0.46666667
        %v230 = vsel %vm229, %v207, 0.0
        %v231 = vadd.f32 %v230, 0.0
        %vm232 = vcmp.gt.f32.partialorder %v201, 0.53333336
        %v233 = vsel %vm232, %v207, 0.0
        %v234 = vadd.f32 %v233, 0.0
        %vm235 = vcmp.gt.f32.partialorder %v201, 0.6
        %v236 = vsel %vm235, %v207, 0.0
        %v237 = vadd.f32 %v236, 0.0
        %vm238 = vcmp.gt.f32.partialorder %v201, 0.6666667
        %v239 = vsel %vm238, %v207, 0.0
        %v240 = vadd.f32 %v239, 0.0
        %vm241 = vcmp.gt.f32.partialorder %v201, 0.73333335
        %v242 = vsel %vm241, %v207, 0.0
        %v243 = vadd.f32 %v242, 0.0
        %vm244 = vcmp.gt.f32.partialorder %v201, 0.8
        %v245 = vsel %vm244, %v207, 0.0
        %v246 = vadd.f32 %v245, 0.0
        %vm247 = vcmp.gt.f32.partialorder %v201, 0.8666667
        %v248 = vsel %vm247, %v207, 0.0
        %v249 = vadd.f32 %v248, 0.0
        %vm250 = vcmp.gt.f32.partialorder %v201, 0.93333334
        %v251 = vsel %vm250, %v207, 0.0
        %v252 = vadd.f32 %v251, 0.0
        %vm253 = vcmp.gt.f32.partialorder %v201, 1.0
        %v254 = vsel %vm253, %v207, 0.0
        %v255 = vadd.f32 %v254, 0.0
        %256 = vst [vmem:[%s199] sm:$0xff] %v210
        %257 = vst [vmem:[%s199 + $0x8] sm:$0xff] %v213
        %258 = vst [vmem:[%s199 + $0x10] sm:$0xff] %v216
        %259 = vst [vmem:[%s199 + $0x18] sm:$0xff] %v219
        %260 = vst [vmem:[%s199 + $0x20] sm:$0xff] %v222
        %261 = vst [vmem:[%s199 + $0x28] sm:$0xff] %v225
        %262 = vst [vmem:[%s199 + $0x30] sm:$0xff] %v228
        %263 = vst [vmem:[%s199 + $0x38] sm:$0xff] %v231
        %264 = vst [vmem:[%s199 + $0x40] sm:$0xff] %v234
        %265 = vst [vmem:[%s199 + $0x48] sm:$0xff] %v237
        %266 = vst [vmem:[%s199 + $0x50] sm:$0xff] %v240
        %267 = vst [vmem:[%s199 + $0x58] sm:$0xff] %v243
        %268 = vst [vmem:[%s199 + $0x60] sm:$0xff] %v246
        %269 = vst [vmem:[%s199 + $0x68] sm:$0xff] %v249
        %270 = vst [vmem:[%s199 + $0x70] sm:$0xff] %v252
        %271 = vst [vmem:[%s199 + $0x78] sm:$0xff] %v255
        %s272 = sand.u32 %s82, 1
        %s273 = scalar_lea.sflag [#allocation4], %s272
        %s274 = sand.u32 %s82, 1
        %s275 = smul.addr %s274, 128
        %s276 = scalar_lea.vmem [#allocation7], %s275
        // Predicated region
        $region37: #{tpu_custom_call.1} parent=27 // pred_check
          %p277 = pneg %p92
        $region38: #{tpu_custom_call.1} parent=27 // pred_check_branch
          %279 = sbr.rel (%p277) target = $region40
        $region39: #{tpu_custom_call.1} parent=27 // pred_region
          %s280 = smul.u32 16, %s22
          %282 = vsyncadd %s273, 0
          %s283 = smul.addr %s280, 8
          %s284 = scalar_lea.hbm %s2, %s283
          %s285 = sshll.u32 %s276, 4
          %s286 = int_to_ptr.vmem [resolvable:$true] %s285
          %s287 = sshll.u32 %s284, 4
          %s288 = int_to_ptr.hbm [resolvable:$true] %s287
          %293 = dma.vmem_to_hbm [thread:$0]  %s286, 2048, %s288, %s273, 128, 128, 8
        $region40: #{tpu_custom_call.1} parent=27 // pred_fallthru
          _
      $region28: #{tpu_custom_call.1} parent=5 // pred_fallthru
        _
      %p294 = scmp.le.s32.totalorder 2, %s17
      // Predicated region
      $region41: #{tpu_custom_call.1} parent=5 // pred_check
        %p295 = pneg %p294
      $region42: #{tpu_custom_call.1} parent=5 // pred_check_branch
        %297 = sbr.rel (%p295) target = $region44
      $region43: #{tpu_custom_call.1} parent=5 // pred_region
        %s298 = ssub.s32 %s17, 2
        // Predicated region
        $region45: #{tpu_custom_call.1} parent=43 // pred_check
          %p299 = pneg %p98
        $region46: #{tpu_custom_call.1} parent=43 // pred_check_branch
          %301 = sbr.rel (%p299) target = $region48
        $region47: #{tpu_custom_call.1} parent=43 // pred_region
          %s302 = sand.u32 %s83, 1
          %s303 = scalar_lea.sflag [#allocation4], %s302
          %s304 = sand.u32 %s83, 1
          %s305 = smul.addr %s304, 128
          %s306 = scalar_lea.vmem [#allocation7], %s305
          %308 = dma.done %s303, 2048
        $region48: #{tpu_custom_call.1} parent=43 // pred_fallthru
          _
      $region44: #{tpu_custom_call.1} parent=5 // pred_fallthru
        _
    $region6: #{tpu_custom_call.1} parent=1 // loop_footer
      %s21 = sadd.s32 1, %s17
    $region7: #{tpu_custom_call.1} parent=1 // loop_footer_branch
      %16 = sbr.rel target = $region3
    $region8: #{tpu_custom_call.1} parent=1 // loop_exit
      _
    %309 = vsyncpa [#allocation3], 1
    %s310 = scalar_lea.sflag [#allocation3], 1
    %311 = vsyncpa %s310, 1
    %312 = vsyncpa [#allocation6], 1
    %s313 = scalar_lea.sflag [#allocation6], 1
    %314 = vsyncpa %s313, 1
    %315 = vsyncpa [#allocation4], 1
    %s316 = scalar_lea.sflag [#allocation4], 1
    %317 = vsyncpa %s316, 1

</llo_original>
